<compile_context>
chip_gen: v5e
topology: v5e:2x2
jax: 0.10.0
libtpu: 0.0.40
codegen_flags: <defaults>
</compile_context>

<pallas_src>
import jax
import jax.numpy as jnp
from jax.experimental import pallas as pl
from jax.experimental.pallas import tpu as pltpu

_SMALL_BYTES = 256 * 1024   # below this, return x directly (pure Identity)
_CHUNK_1MB = 1 << 20
_CHUNK_8MB = 8 << 20


def _make_dma_copy_kernel(bounds):
    """Build a kernel copying src->dst via len(bounds) concurrent HBM DMAs."""
    single = len(bounds) == 1

    def kernel(x_ref, o_ref, sem):
        if single:
            # Whole-ref copy: one DMA descriptor, no slicing needed.
            cp = pltpu.make_async_copy(x_ref, o_ref, sem.at[0])
            cp.start()
            cp.wait()
            return
        copies = []
        for i, (start, size) in enumerate(bounds):
            cp = pltpu.make_async_copy(
                x_ref.at[pl.ds(start, size)],
                o_ref.at[pl.ds(start, size)],
                sem.at[i],
            )
            cp.start()            # launch all chunks -> concurrent DMA streams
            copies.append(cp)
        for cp in copies:
            cp.wait()

    return kernel


def _chunk_bounds(lead, num_chunks, align):
    """Static (start, size) chunks along the leading axis, align-rounded."""
    if num_chunks <= 1 or lead < 2 * align:
        return [(0, lead)]
    base = -(-lead // num_chunks)          # ceil division
    base = -(-base // align) * align       # round chunk size up to `align`
    bounds = []
    start = 0
    while start < lead:
        size = min(base, lead - start)
        bounds.append((start, size))
        start += size
    return bounds


def identity(x: jax.Array, *, min_kernel_bytes: int = _SMALL_BYTES) -> jax.Array:
    """Pallas implementation of nn.Identity: returns `x` unchanged in value.

    Tiny tensors are returned as-is (zero cost). Larger tensors are copied with
    a direct HBM->HBM DMA (no VMEM staging), chunked into up to 4 concurrent
    DMA streams along the leading axis.
    """
    if x.size == 0:
        return x
    nbytes = x.size * x.dtype.itemsize
    if nbytes < min_kernel_bytes:
        return x  # Identity: the cheapest correct answer for small inputs.

    # Number of concurrent DMA streams for the copy.
    if nbytes >= _CHUNK_8MB:
        num_chunks = 4
    elif nbytes >= _CHUNK_1MB:
        num_chunks = 2
    else:
        num_chunks = 1

    # Chunk along the leading axis. For >=3-D arrays leading axes are untiled
    # in HBM so any boundary is fine; for 2-D the leading axis is the sublane
    # dim, so align boundaries to the dtype's sublane tile; <=1-D: whole copy.
    if x.ndim >= 3:
        bounds = _chunk_bounds(x.shape[0], num_chunks, 1)
    elif x.ndim == 2:
        sublane = 8 * max(1, 4 // x.dtype.itemsize)   # f32:8, bf16:16, int8:32
        bounds = _chunk_bounds(x.shape[0], num_chunks, sublane)
    else:
        bounds = [(0, x.shape[0] if x.ndim else 1)]   # single whole-ref DMA

    return pl.pallas_call(
        _make_dma_copy_kernel(bounds),
        out_shape=jax.ShapeDtypeStruct(x.shape, x.dtype),
        in_specs=[pl.BlockSpec(memory_space=pl.ANY)],
        out_specs=pl.BlockSpec(memory_space=pl.ANY),
        scratch_shapes=[pltpu.SemaphoreType.DMA((len(bounds),))],
    )(x)


if __name__ == "__main__":
    key = jax.random.PRNGKey(0)
    k1, k2, k3 = jax.random.split(key, 3)

    # Spec input: nn.Identity on a small NCHW tensor (8 KiB).
    x_small = jax.random.normal(k1, (2, 4, 16, 16), dtype=jnp.float32)
    y_small = identity(x_small)                         # tiny -> pass-through path
    y_small_k = identity(x_small, min_kernel_bytes=0)   # force the DMA kernel path
    jax.block_until_ready((y_small, y_small_k))
    assert y_small.shape == x_small.shape, (y_small.shape, x_small.shape)
    assert y_small.dtype == x_small.dtype, (y_small.dtype, x_small.dtype)
    assert jnp.array_equal(y_small, x_small), "Identity pass-through mismatch"
    assert jnp.array_equal(y_small_k, x_small), "Identity DMA kernel mismatch"

    # Larger 3-D input (2 MiB): exercises the multi-chunk concurrent-DMA path.
    x_big = jax.random.normal(k2, (8, 512, 128), dtype=jnp.float32)
    y_big = identity(x_big)
    jax.block_until_ready(y_big)
    assert jnp.array_equal(y_big, x_big), "Identity multi-chunk DMA mismatch"

    # 2-D input with non-multiple-of-128 dims (~273 KiB): whole-ref DMA path.
    x_odd = jax.random.normal(k3, (136, 513), dtype=jnp.float32)
    y_odd = identity(x_odd)
    jax.block_until_ready(y_odd)
    assert jnp.array_equal(y_odd, x_odd), "Identity odd-shape DMA mismatch"

    print("KERNEL_OK")
</pallas_src>

<mosaic_0001>
module attributes {stable_mosaic.version = 11 : i64} {
  func.func @kernel(%arg0: memref<2x4x16x16xf32, #tpu.memory_space<any>>, %arg1: memref<2x4x16x16xf32, #tpu.memory_space<any>>, %arg2: memref<1x!tpu.dma_semaphore, #tpu.memory_space<semaphore_mem>>) attributes {dimension_semantics = [], scalar_prefetch = 0 : i64, scratch_operands = 1 : i64, tpu.core_type = #tpu.core_type<tc>} {
    %c0_i32 = arith.constant 0 : i32
    %0 = tpu.memref_slice %arg2[%c0_i32] : memref<1x!tpu.dma_semaphore, #tpu.memory_space<semaphore_mem>> -> memref<1x!tpu.dma_semaphore, #tpu.memory_space<semaphore_mem>>
    %1 = tpu.memref_squeeze %0 : memref<1x!tpu.dma_semaphore, #tpu.memory_space<semaphore_mem>> -> memref<!tpu.dma_semaphore, #tpu.memory_space<semaphore_mem>>
    tpu.enqueue_dma source(%arg0 : memref<2x4x16x16xf32, #tpu.memory_space<any>>) target(%arg1 : memref<2x4x16x16xf32, #tpu.memory_space<any>>) target_semaphore(%1 : memref<!tpu.dma_semaphore, #tpu.memory_space<semaphore_mem>>)
    %c0_i32_0 = arith.constant 0 : i32
    %2 = tpu.memref_slice %arg2[%c0_i32_0] : memref<1x!tpu.dma_semaphore, #tpu.memory_space<semaphore_mem>> -> memref<1x!tpu.dma_semaphore, #tpu.memory_space<semaphore_mem>>
    %3 = tpu.memref_squeeze %2 : memref<1x!tpu.dma_semaphore, #tpu.memory_space<semaphore_mem>> -> memref<!tpu.dma_semaphore, #tpu.memory_space<semaphore_mem>>
    tpu.wait_dma2 semaphore(%3 : memref<!tpu.dma_semaphore, #tpu.memory_space<semaphore_mem>>) src(%arg0 : memref<2x4x16x16xf32, #tpu.memory_space<any>>) dst(%arg1 : memref<2x4x16x16xf32, #tpu.memory_space<any>>)
    return
  }
}

</mosaic_0001>

<llo_original>
// kernel: tpu_custom_call.1
$region0: #{tpu_custom_call.1}
  #allocation0 [shape = 'u32[]', space=smem, size = 0x4, offset = 0x4, fixed_abs, tag = 'smem constant byte address 0x4 - core index']
  #allocation1 [shape = 'u32[72,128]{1,0:T(1,128)}', space=vmem, size = 0x9000, scoped, tag = 'internal scratch']
  #allocation2 [shape = 's32[1]{0}', space=sflag, size = 0x4, scoped, tag = 'scratch operand']
  #allocation3 [shape = 's32[]', space=sflag, size = 0x4, offset = 0, fixed_abs, tag = 'sflag constant byte address 0x0 - dummy sync flag']
  #allocation4 [shape = 'u32[0]{0}', space=smem, size = 0, offset = 0, fixed_abs, tag = 'smem constant byte address 0x0 - null']
  %s0 = inlined_call_operand.hbm [shape: f32[2,4,16,16], index: 0, kind: input, shape index: {}]
  %s1 = inlined_call_operand.hbm [shape: f32[2,4,16,16], index: 1, kind: output, shape index: {}]
  %s2 = sld [smem:[#allocation0]]
  $region2: #{tpu_custom_call.1} parent=0
    _
  %s4 = ssub.s32 1, %s2
  %s5 = scalar_select 0, %s4, %s2
  %s7 = sshll.u32 1, 14
  %s8 = sxor.u32 4294967295, %s7
  %s10 = sshll.u32 %s0, 4
  %s11 = int_to_ptr.hbm [resolvable:$true] %s10
  %s12 = sshll.u32 %s1, 4
  %s13 = int_to_ptr.hbm [resolvable:$true] %s12
  %16 = dma.general %s11, 2048, %s13, [#allocation2], [#allocation3], [#allocation4], 0, 0
  %s17 = smul.u32 2, 4
  %s18 = smul.u32 %s17, 16
  %s19 = smul.u32 %s18, 1
  %s20 = sshll.u32 %s19, 4
  %21 = dma.done [#allocation2], %s20
  %22 = vsyncmov [#allocation2]
  %s23 = vpop.sfrf %22
  %p24 = scmp.eq.s32.totalorder %s23, 0
  %p25 = pneg %p24
  %27 = shalt.err (%p25)

</llo_original>
